<compile_context>
chip_gen: v5e
topology: v5e:2x2
jax: 0.10.0
libtpu: 0.0.40
codegen_flags: <defaults>
</compile_context>

<pallas_src>
import functools

import jax
import jax.numpy as jnp
from jax.experimental import pallas as pl
from jax.experimental.pallas import tpu as pltpu


def _resrnn_kernel(x_ref, wi_ref, b_ref, wh_ref, out_ref, *,
                   lag, b_tile, res_depth):
    """One batch tile of the ResRNN recurrence.

    x_ref  : (lag*b_tile, d_in)   time-major rows (row i*b_tile + b == x[b, i, :])
    wi_ref : (d_in, Hp)           i2h.weight.T, zero-padded to Hp lanes
    b_ref  : (1, Hp)              i2h.bias + h2h.bias (folded), zero-padded
    wh_ref : (Hp, Hp)             h2h.weight.T, zero-padded rows & cols
    out_ref: (lag*b_tile, Hp) f32 row i*b_tile + b == pre-update hn_i[b]
    """
    hp = out_ref.shape[-1]

    # ---- Phase 1: hoisted i2h projection (+ folded bias) for ALL timesteps,
    # written straight into out_ref as one lane-dense store. ----------------
    out_ref[...] = (
        jnp.dot(x_ref[...], wi_ref[...], preferred_element_type=jnp.float32)
        + b_ref[...])

    wh = wh_ref[...]

    def rows(i):  # static, sublane-aligned slice of the current output block
        return out_ref[i * b_tile:(i + 1) * b_tile, :]

    # ---- Phase 2: serial recurrence, statically unrolled (small lag). ------
    # The PyTorch branch structure depends only on static (i, lag, res_depth),
    # so it resolves at trace time: no predication, no scratch state.
    # TODO(synk): for large lag (>~32) switch the regular res_depth region to
    # a lax.fori_loop to bound vreg pressure and compile time.
    h0 = jnp.zeros((b_tile, hp), jnp.float32)
    ht = h0
    hstart = None
    for i in range(lag):
        if i <= 1:
            # h0 is still its initial zeros before steps 0 and 1, so h2h(h0)
            # contributes only its bias (already folded): the rows already in
            # out_ref are the correct hn -> no matmul, no store-back.
            hn = rows(i)
        else:
            hn = rows(i) + jnp.dot(h0, wh, preferred_element_type=jnp.float32)
            out_ref[i * b_tile:(i + 1) * b_tile, :] = hn   # pre-update hn

        # Mirrors the PyTorch if/elif chain exactly (all-static predicates).
        if i == 0:
            hstart = hn
        elif i == lag - 2:
            h0 = jnp.tanh(hn + hstart)
        elif res_depth == 1:
            h0 = jnp.tanh(hn + h0)
        elif i % res_depth == 0:
            h0 = jnp.tanh(hn + ht)
            ht = hn
        else:
            h0 = jnp.tanh(hn)


def res_rnn_cell_forward(x_bld, wi, bi, wh, bh, *, res_depth,
                         b_tile=8, compute_dtype=jnp.bfloat16):
    """x_bld: (B, lag, inputDim) batch-first, like the PyTorch module.
    wi: (inputDim, H) = i2h.weight.T, bi: (1, H) = i2h.bias
    wh: (H, H)        = h2h.weight.T, bh: (1, H) = h2h.bias
    Returns (lag, B, H) == torch.cat(outputs, 0), float32.

    compute_dtype: dtype of the hoisted i2h GEMM inputs (bf16 by default);
    accumulation and the serial recurrence are always f32.
    """
    B, lag, d_in = x_bld.shape
    H = wi.shape[1]

    LANE, SUB = 128, 8
    hp = max(LANE, -(-H // LANE) * LANE)          # lane-dense hidden dim
    b_tile = max(SUB, -(-b_tile // SUB) * SUB)    # sublane-aligned batch tile
    # NOTE(v7x): pick b_tile so 2*(x block + out block) + weights stays well
    # under the 64 MiB/TensorCore VMEM; the "parallel" batch grid axis then
    # keeps both TensorCores busy.
    b_pad = -(-B // b_tile) * b_tile
    nb = b_pad // b_tile

    # ---- wrapper-side layout plumbing (cheap XLA copies, not compute) ------
    # Time-major, batch-tiled x: tile j, row i*b_tile + b == x[j*b_tile+b, i, :]
    xp = jnp.zeros((b_pad, lag, d_in), compute_dtype)
    xp = xp.at[:B].set(x_bld.astype(compute_dtype))
    x_tm = (xp.reshape(nb, b_tile, lag, d_in)
              .transpose(0, 2, 1, 3)
              .reshape(nb, lag * b_tile, d_in))

    # Lane-padded weights and folded bias (bi + bh).  Zero padding keeps the
    # padded hidden lanes exactly 0 throughout the recurrence.
    wip = jnp.zeros((d_in, hp), compute_dtype).at[:, :H].set(
        wi.astype(compute_dtype))
    whp = jnp.zeros((hp, hp), jnp.float32).at[:H, :H].set(
        wh.astype(jnp.float32))
    bp = jnp.zeros((1, hp), jnp.float32).at[:, :H].set(
        (bi.reshape(1, H) + bh.reshape(1, H)).astype(jnp.float32))

    # Explicit scoped-VMEM budget: double-buffered x/out blocks + weights.
    itemsize = jnp.dtype(compute_dtype).itemsize
    x_blk = lag * b_tile * d_in * itemsize
    o_blk = lag * b_tile * hp * 4
    w_tot = d_in * hp * itemsize + hp * 4 + hp * hp * 4
    vmem_bytes = int(min(max(2 * (x_blk + o_blk) + 2 * w_tot + (4 << 20),
                             32 << 20), 64 << 20))

    kernel = functools.partial(_resrnn_kernel, lag=lag, b_tile=b_tile,
                               res_depth=res_depth)
    # TODO(synk): if downstream consumes bf16, make out_shape bf16 and cast hn
    # at the store to halve the (lag, B, H) HBM writeback.
    out3 = pl.pallas_call(
        kernel,
        out_shape=jax.ShapeDtypeStruct((nb, lag * b_tile, hp), jnp.float32),
        grid_spec=pltpu.PrefetchScalarGridSpec(
            num_scalar_prefetch=0,
            grid=(nb,),                       # batch tiles are independent
            in_specs=[
                pl.BlockSpec((None, lag * b_tile, d_in), lambda j: (j, 0, 0)),
                pl.BlockSpec((d_in, hp), lambda j: (0, 0)),
                pl.BlockSpec((1, hp), lambda j: (0, 0)),
                pl.BlockSpec((hp, hp), lambda j: (0, 0)),
            ],
            out_specs=pl.BlockSpec((None, lag * b_tile, hp),
                                   lambda j: (j, 0, 0)),
        ),
        compiler_params=pltpu.CompilerParams(
            dimension_semantics=("parallel",),
            vmem_limit_bytes=vmem_bytes),
    )(x_tm, wip, bp, whp)

    # Undo the layout plumbing: (nb, lag*b_tile, Hp) -> (lag, B, H).
    out = (out3.reshape(nb, lag, b_tile, hp)
               .transpose(1, 0, 2, 3)
               .reshape(lag, b_pad, hp))
    return out[:, :B, :H]


def res_rnn_cell_ref(x_bld, wi, bi, wh, bh, *, res_depth,
                     gemm_dtype=jnp.float32):
    """Pure-JAX reference mirroring the PyTorch control flow exactly.
    gemm_dtype lets us match the kernel's bf16 input rounding for the
    performance-path check (f32 by default == exact PyTorch semantics)."""
    B, lag, _ = x_bld.shape
    H = wi.shape[1]
    xg = x_bld.astype(gemm_dtype)
    wig = wi.astype(gemm_dtype)
    h0 = jnp.zeros((B, H), jnp.float32)
    ht = h0
    hstart = None
    outs = []
    for i in range(lag):
        hn = (jnp.dot(xg[:, i, :], wig, preferred_element_type=jnp.float32)
              + bi + h0 @ wh + bh)
        if i == 0:
            hstart = hn
        elif i == lag - 2:
            h0 = jnp.tanh(hn + hstart)
        elif res_depth == 1:
            h0 = jnp.tanh(hn + h0)
        elif i % res_depth == 0:
            h0 = jnp.tanh(hn + ht)
            ht = hn
        else:
            h0 = jnp.tanh(hn)
        outs.append(hn)
    return jnp.stack(outs, 0)  # (lag, B, H)


if __name__ == "__main__":
    # Module hyperparameters (small, consistent with the forward pass).
    B, lag = 2, 8
    input_dim, hidden_num, output_dim = 16, 32, 1   # output_dim unused in forward

    key = jax.random.PRNGKey(0)
    kx, kwi, kbi, kwh, kbh = jax.random.split(key, 5)

    x = jax.random.normal(kx, (B, lag, input_dim), jnp.float32)
    # nn.Linear parameters, stored transposed so y = x @ W + b.
    wi = 0.1 * jax.random.normal(kwi, (input_dim, hidden_num), jnp.float32)   # i2h.weight.T
    bi = 0.1 * jax.random.normal(kbi, (1, hidden_num), jnp.float32)           # i2h.bias
    wh = 0.1 * jax.random.normal(kwh, (hidden_num, hidden_num), jnp.float32)  # h2h.weight.T
    bh = 0.1 * jax.random.normal(kbh, (1, hidden_num), jnp.float32)           # h2h.bias
    # h2o / fc exist in __init__ but are never used in forward(); omitted.

    # Cover every branch of the if/elif chain: resDepth == 1, the modulo
    # branch (resDepth 2 / 3), the else branch, i == 0 and i == lag - 2.
    for res_depth in (1, 2, 3):
        ref_f32 = res_rnn_cell_ref(x, wi, bi, wh, bh, res_depth=res_depth)

        # Exact-semantics path (f32 GEMM inputs): tight tolerance.
        out_f32 = jax.block_until_ready(res_rnn_cell_forward(
            x, wi, bi, wh, bh, res_depth=res_depth,
            compute_dtype=jnp.float32))
        assert out_f32.shape == (lag, B, hidden_num)
        assert jnp.allclose(out_f32, ref_f32, atol=1e-4, rtol=1e-4), (
            f"f32 path mismatch vs reference for res_depth={res_depth}")

        # Performance path (bf16 GEMM inputs): compare against a reference
        # that applies the same bf16 rounding to x / wi (recurrence in f32).
        out_bf16 = jax.block_until_ready(res_rnn_cell_forward(
            x, wi, bi, wh, bh, res_depth=res_depth,
            compute_dtype=jnp.bfloat16))
        ref_bf16 = res_rnn_cell_ref(x, wi, bi, wh, bh, res_depth=res_depth,
                                    gemm_dtype=jnp.bfloat16)
        assert out_bf16.shape == (lag, B, hidden_num)
        assert jnp.allclose(out_bf16, ref_bf16, atol=2e-3, rtol=2e-3), (
            f"bf16 path mismatch vs matched reference for res_depth={res_depth}")

    print("KERNEL_OK")
</pallas_src>

<mosaic_0001>
module attributes {stable_mosaic.version = 11 : i64} {
  func.func @_resrnn_kernel(%arg0: i32, %arg1: memref<1x64x16xf32, #tpu.memory_space<vmem>>, %arg2: memref<16x128xf32, #tpu.memory_space<vmem>>, %arg3: memref<1x128xf32, #tpu.memory_space<vmem>>, %arg4: memref<128x128xf32, #tpu.memory_space<vmem>>, %arg5: memref<1x64x128xf32, #tpu.memory_space<vmem>>) attributes {dimension_semantics = [#tpu.dimension_semantics<parallel>], iteration_bounds = array<i64: 1>, scalar_prefetch = 0 : i64, scratch_operands = 0 : i64, tpu.core_type = #tpu.core_type<tc>, window_params = [{transform_indices = @transform_0, window_bounds = array<i64: 1, 64, 16>}, {pipeline_mode = #tpu.pipeline_mode<synchronous>, transform_indices = @transform_1, window_bounds = array<i64: 16, 128>}, {pipeline_mode = #tpu.pipeline_mode<synchronous>, transform_indices = @transform_2, window_bounds = array<i64: 1, 128>}, {pipeline_mode = #tpu.pipeline_mode<synchronous>, transform_indices = @transform_3, window_bounds = array<i64: 128, 128>}, {transform_indices = @transform_4, window_bounds = array<i64: 1, 64, 128>}]} {
    %c0 = arith.constant 0 : index
    %c0_0 = arith.constant 0 : index
    %c0_1 = arith.constant 0 : index
    %0 = vector.load %arg1[%c0, %c0_0, %c0_1] : memref<1x64x16xf32, #tpu.memory_space<vmem>>, vector<1x64x16xf32>
    %1 = vector.shape_cast %0 : vector<1x64x16xf32> to vector<64x16xf32>
    %c0_2 = arith.constant 0 : index
    %c0_3 = arith.constant 0 : index
    %2 = vector.load %arg2[%c0_2, %c0_3] : memref<16x128xf32, #tpu.memory_space<vmem>>, vector<16x128xf32>
    %cst = arith.constant dense<0.000000e+00> : vector<64x128xf32>
    %3 = tpu.matmul %1, %2, %cst {dimension_numbers = #tpu.dot_dimension_numbers<[1], [0], [0], [1], [0, 0, 1, 1], [], []>} : vector<64x16xf32>, vector<16x128xf32>, vector<64x128xf32> -> vector<64x128xf32>
    %c0_4 = arith.constant 0 : index
    %c0_5 = arith.constant 0 : index
    %4 = vector.load %arg3[%c0_4, %c0_5] : memref<1x128xf32, #tpu.memory_space<vmem>>, vector<1x128xf32>
    %5 = vector.broadcast %4 : vector<1x128xf32> to vector<64x128xf32>
    %6 = arith.addf %3, %5 : vector<64x128xf32>
    %c0_6 = arith.constant 0 : index
    %c0_7 = arith.constant 0 : index
    %c0_8 = arith.constant 0 : index
    %7 = vector.load %arg5[%c0_6, %c0_7, %c0_8] : memref<1x64x128xf32, #tpu.memory_space<vmem>>, vector<1x64x128xf32>
    %8 = vector.shape_cast %7 : vector<1x64x128xf32> to vector<64x128xf32>
    %9 = vector.shape_cast %6 : vector<64x128xf32> to vector<1x64x128xf32>
    tpu.vector_store %arg5[%c0_6, %c0_7, %c0_8], %9 {strides = array<i32>} : memref<1x64x128xf32, #tpu.memory_space<vmem>>, vector<1x64x128xf32>,
    %c0_9 = arith.constant 0 : index
    %c0_10 = arith.constant 0 : index
    %10 = vector.load %arg4[%c0_9, %c0_10] : memref<128x128xf32, #tpu.memory_space<vmem>>, vector<128x128xf32>
    %cst_11 = arith.constant 0.000000e+00 : f32
    %11 = vector.broadcast %cst_11 : f32 to vector<8x128xf32>
    %c0_12 = arith.constant 0 : index
    %c0_13 = arith.constant 0 : index
    %c0_14 = arith.constant 0 : index
    %12 = vector.load %arg5[%c0_12, %c0_13, %c0_14] : memref<1x64x128xf32, #tpu.memory_space<vmem>>, vector<1x8x128xf32>
    %13 = vector.shape_cast %12 : vector<1x8x128xf32> to vector<8x128xf32>
    %c0_15 = arith.constant 0 : index
    %c8 = arith.constant 8 : index
    %c0_16 = arith.constant 0 : index
    %14 = vector.load %arg5[%c0_15, %c8, %c0_16] : memref<1x64x128xf32, #tpu.memory_space<vmem>>, vector<1x8x128xf32>
    %15 = vector.shape_cast %14 : vector<1x8x128xf32> to vector<8x128xf32>
    %16 = arith.addf %15, %11 : vector<8x128xf32>
    %17 = math.tanh %16 : vector<8x128xf32>
    %c0_17 = arith.constant 0 : index
    %c16 = arith.constant 16 : index
    %c0_18 = arith.constant 0 : index
    %18 = vector.load %arg5[%c0_17, %c16, %c0_18] : memref<1x64x128xf32, #tpu.memory_space<vmem>>, vector<1x8x128xf32>
    %19 = vector.shape_cast %18 : vector<1x8x128xf32> to vector<8x128xf32>
    %cst_19 = arith.constant dense<0.000000e+00> : vector<8x128xf32>
    %20 = tpu.matmul %17, %10, %cst_19 {dimension_numbers = #tpu.dot_dimension_numbers<[1], [0], [0], [1], [0, 0, 1, 1], [], []>} : vector<8x128xf32>, vector<128x128xf32>, vector<8x128xf32> -> vector<8x128xf32>
    %21 = arith.addf %19, %20 : vector<8x128xf32>
    %c0_20 = arith.constant 0 : index
    %c16_21 = arith.constant 16 : index
    %c0_22 = arith.constant 0 : index
    %22 = vector.load %arg5[%c0_20, %c16_21, %c0_22] : memref<1x64x128xf32, #tpu.memory_space<vmem>>, vector<1x8x128xf32>
    %23 = vector.shape_cast %22 : vector<1x8x128xf32> to vector<8x128xf32>
    %24 = vector.shape_cast %21 : vector<8x128xf32> to vector<1x8x128xf32>
    tpu.vector_store %arg5[%c0_20, %c16_21, %c0_22], %24 {strides = array<i32>} : memref<1x64x128xf32, #tpu.memory_space<vmem>>, vector<1x8x128xf32>,
    %25 = arith.addf %21, %17 : vector<8x128xf32>
    %26 = math.tanh %25 : vector<8x128xf32>
    %c0_23 = arith.constant 0 : index
    %c24 = arith.constant 24 : index
    %c0_24 = arith.constant 0 : index
    %27 = vector.load %arg5[%c0_23, %c24, %c0_24] : memref<1x64x128xf32, #tpu.memory_space<vmem>>, vector<1x8x128xf32>
    %28 = vector.shape_cast %27 : vector<1x8x128xf32> to vector<8x128xf32>
    %cst_25 = arith.constant dense<0.000000e+00> : vector<8x128xf32>
    %29 = tpu.matmul %26, %10, %cst_25 {dimension_numbers = #tpu.dot_dimension_numbers<[1], [0], [0], [1], [0, 0, 1, 1], [], []>} : vector<8x128xf32>, vector<128x128xf32>, vector<8x128xf32> -> vector<8x128xf32>
    %30 = arith.addf %28, %29 : vector<8x128xf32>
    %c0_26 = arith.constant 0 : index
    %c24_27 = arith.constant 24 : index
    %c0_28 = arith.constant 0 : index
    %31 = vector.load %arg5[%c0_26, %c24_27, %c0_28] : memref<1x64x128xf32, #tpu.memory_space<vmem>>, vector<1x8x128xf32>
    %32 = vector.shape_cast %31 : vector<1x8x128xf32> to vector<8x128xf32>
    %33 = vector.shape_cast %30 : vector<8x128xf32> to vector<1x8x128xf32>
    tpu.vector_store %arg5[%c0_26, %c24_27, %c0_28], %33 {strides = array<i32>} : memref<1x64x128xf32, #tpu.memory_space<vmem>>, vector<1x8x128xf32>,
    %34 = arith.addf %30, %26 : vector<8x128xf32>
    %35 = math.tanh %34 : vector<8x128xf32>
    %c0_29 = arith.constant 0 : index
    %c32 = arith.constant 32 : index
    %c0_30 = arith.constant 0 : index
    %36 = vector.load %arg5[%c0_29, %c32, %c0_30] : memref<1x64x128xf32, #tpu.memory_space<vmem>>, vector<1x8x128xf32>
    %37 = vector.shape_cast %36 : vector<1x8x128xf32> to vector<8x128xf32>
    %cst_31 = arith.constant dense<0.000000e+00> : vector<8x128xf32>
    %38 = tpu.matmul %35, %10, %cst_31 {dimension_numbers = #tpu.dot_dimension_numbers<[1], [0], [0], [1], [0, 0, 1, 1], [], []>} : vector<8x128xf32>, vector<128x128xf32>, vector<8x128xf32> -> vector<8x128xf32>
    %39 = arith.addf %37, %38 : vector<8x128xf32>
    %c0_32 = arith.constant 0 : index
    %c32_33 = arith.constant 32 : index
    %c0_34 = arith.constant 0 : index
    %40 = vector.load %arg5[%c0_32, %c32_33, %c0_34] : memref<1x64x128xf32, #tpu.memory_space<vmem>>, vector<1x8x128xf32>
    %41 = vector.shape_cast %40 : vector<1x8x128xf32> to vector<8x128xf32>
    %42 = vector.shape_cast %39 : vector<8x128xf32> to vector<1x8x128xf32>
    tpu.vector_store %arg5[%c0_32, %c32_33, %c0_34], %42 {strides = array<i32>} : memref<1x64x128xf32, #tpu.memory_space<vmem>>, vector<1x8x128xf32>,
    %43 = arith.addf %39, %35 : vector<8x128xf32>
    %44 = math.tanh %43 : vector<8x128xf32>
    %c0_35 = arith.constant 0 : index
    %c40 = arith.constant 40 : index
    %c0_36 = arith.constant 0 : index
    %45 = vector.load %arg5[%c0_35, %c40, %c0_36] : memref<1x64x128xf32, #tpu.memory_space<vmem>>, vector<1x8x128xf32>
    %46 = vector.shape_cast %45 : vector<1x8x128xf32> to vector<8x128xf32>
    %cst_37 = arith.constant dense<0.000000e+00> : vector<8x128xf32>
    %47 = tpu.matmul %44, %10, %cst_37 {dimension_numbers = #tpu.dot_dimension_numbers<[1], [0], [0], [1], [0, 0, 1, 1], [], []>} : vector<8x128xf32>, vector<128x128xf32>, vector<8x128xf32> -> vector<8x128xf32>
    %48 = arith.addf %46, %47 : vector<8x128xf32>
    %c0_38 = arith.constant 0 : index
    %c40_39 = arith.constant 40 : index
    %c0_40 = arith.constant 0 : index
    %49 = vector.load %arg5[%c0_38, %c40_39, %c0_40] : memref<1x64x128xf32, #tpu.memory_space<vmem>>, vector<1x8x128xf32>
    %50 = vector.shape_cast %49 : vector<1x8x128xf32> to vector<8x128xf32>
    %51 = vector.shape_cast %48 : vector<8x128xf32> to vector<1x8x128xf32>
    tpu.vector_store %arg5[%c0_38, %c40_39, %c0_40], %51 {strides = array<i32>} : memref<1x64x128xf32, #tpu.memory_space<vmem>>, vector<1x8x128xf32>,
    %52 = arith.addf %48, %44 : vector<8x128xf32>
    %53 = math.tanh %52 : vector<8x128xf32>
    %c0_41 = arith.constant 0 : index
    %c48 = arith.constant 48 : index
    %c0_42 = arith.constant 0 : index
    %54 = vector.load %arg5[%c0_41, %c48, %c0_42] : memref<1x64x128xf32, #tpu.memory_space<vmem>>, vector<1x8x128xf32>
    %55 = vector.shape_cast %54 : vector<1x8x128xf32> to vector<8x128xf32>
    %cst_43 = arith.constant dense<0.000000e+00> : vector<8x128xf32>
    %56 = tpu.matmul %53, %10, %cst_43 {dimension_numbers = #tpu.dot_dimension_numbers<[1], [0], [0], [1], [0, 0, 1, 1], [], []>} : vector<8x128xf32>, vector<128x128xf32>, vector<8x128xf32> -> vector<8x128xf32>
    %57 = arith.addf %55, %56 : vector<8x128xf32>
    %c0_44 = arith.constant 0 : index
    %c48_45 = arith.constant 48 : index
    %c0_46 = arith.constant 0 : index
    %58 = vector.load %arg5[%c0_44, %c48_45, %c0_46] : memref<1x64x128xf32, #tpu.memory_space<vmem>>, vector<1x8x128xf32>
    %59 = vector.shape_cast %58 : vector<1x8x128xf32> to vector<8x128xf32>
    %60 = vector.shape_cast %57 : vector<8x128xf32> to vector<1x8x128xf32>
    tpu.vector_store %arg5[%c0_44, %c48_45, %c0_46], %60 {strides = array<i32>} : memref<1x64x128xf32, #tpu.memory_space<vmem>>, vector<1x8x128xf32>,
    %61 = arith.addf %57, %13 : vector<8x128xf32>
    %62 = math.tanh %61 : vector<8x128xf32>
    %c0_47 = arith.constant 0 : index
    %c56 = arith.constant 56 : index
    %c0_48 = arith.constant 0 : index
    %63 = vector.load %arg5[%c0_47, %c56, %c0_48] : memref<1x64x128xf32, #tpu.memory_space<vmem>>, vector<1x8x128xf32>
    %64 = vector.shape_cast %63 : vector<1x8x128xf32> to vector<8x128xf32>
    %cst_49 = arith.constant dense<0.000000e+00> : vector<8x128xf32>
    %65 = tpu.matmul %62, %10, %cst_49 {dimension_numbers = #tpu.dot_dimension_numbers<[1], [0], [0], [1], [0, 0, 1, 1], [], []>} : vector<8x128xf32>, vector<128x128xf32>, vector<8x128xf32> -> vector<8x128xf32>
    %66 = arith.addf %64, %65 : vector<8x128xf32>
    %c0_50 = arith.constant 0 : index
    %c56_51 = arith.constant 56 : index
    %c0_52 = arith.constant 0 : index
    %67 = vector.load %arg5[%c0_50, %c56_51, %c0_52] : memref<1x64x128xf32, #tpu.memory_space<vmem>>, vector<1x8x128xf32>
    %68 = vector.shape_cast %67 : vector<1x8x128xf32> to vector<8x128xf32>
    %69 = vector.shape_cast %66 : vector<8x128xf32> to vector<1x8x128xf32>
    tpu.vector_store %arg5[%c0_50, %c56_51, %c0_52], %69 {strides = array<i32>} : memref<1x64x128xf32, #tpu.memory_space<vmem>>, vector<1x8x128xf32>,
    return
  }
  func.func @transform_0(%arg0: i32) -> (i32, i32, i32) {
    %c0_i32 = arith.constant 0 : i32
    %c0_i32_0 = arith.constant 0 : i32
    %c0_i32_1 = arith.constant 0 : i32
    return %arg0, %c0_i32, %c0_i32_0 : i32, i32, i32
  }
  func.func @transform_1(%arg0: i32) -> (i32, i32) {
    %c0_i32 = arith.constant 0 : i32
    %c0_i32_0 = arith.constant 0 : i32
    %c0_i32_1 = arith.constant 0 : i32
    return %c0_i32, %c0_i32_0 : i32, i32
  }
  func.func @transform_2(%arg0: i32) -> (i32, i32) {
    %c0_i32 = arith.constant 0 : i32
    %c0_i32_0 = arith.constant 0 : i32
    %c0_i32_1 = arith.constant 0 : i32
    return %c0_i32, %c0_i32_0 : i32, i32
  }
  func.func @transform_3(%arg0: i32) -> (i32, i32) {
    %c0_i32 = arith.constant 0 : i32
    %c0_i32_0 = arith.constant 0 : i32
    %c0_i32_1 = arith.constant 0 : i32
    return %c0_i32, %c0_i32_0 : i32, i32
  }
  func.func @transform_4(%arg0: i32) -> (i32, i32, i32) {
    %c0_i32 = arith.constant 0 : i32
    %c0_i32_0 = arith.constant 0 : i32
    %c0_i32_1 = arith.constant 0 : i32
    return %arg0, %c0_i32, %c0_i32_0 : i32, i32, i32
  }
}

</mosaic_0001>

<llo_original>
// kernel: tpu_custom_call.1
$region0: #{tpu_custom_call.1}
  #allocation0 [shape = 'u32[]', space=smem, size = 0x4, offset = 0x4, fixed_abs, tag = 'smem constant byte address 0x4 - core index']
  #allocation1 [shape = 'u32[72,128]{1,0:T(1,128)}', space=vmem, size = 0x9000, scoped, tag = 'internal scratch']
  %s0 = inlined_call_operand.vmem [shape: f32[1,64,16], index: 0, kind: input, shape index: {}]
  %s1 = inlined_call_operand.vmem [shape: f32[16,128], index: 1, kind: input, shape index: {}]
  %s2 = inlined_call_operand.vmem [shape: f32[1,128], index: 2, kind: input, shape index: {}]
  %s3 = inlined_call_operand.hbm [shape: f32[128,128], index: 3, kind: input, shape index: {}]
  %s4 = inlined_call_operand.hbm [shape: f32[1,64,128], index: 4, kind: output, shape index: {}]
  %s5 = sld [smem:[#allocation0]]
  $region30: #{tpu_custom_call.1} parent=0
    _
  %s7 = ssub.s32 1, %s5
  %s8 = scalar_select 0, %s7, %s5
  $region1: #{tpu_custom_call.1} parent=0
    #allocation2 [shape = 'u8[65536]{0}', space=vmem, size = 0x10000, scoped, tag = 'input window, operand 3, single buffered']
    #allocation3 [shape = 's32[1]{0}', space=sflag, size = 0x4, scoped, tag = 'scoped memory for tpu_custom_call.1']
    #allocation4 [shape = 's32[1]{0}', space=sflag, size = 0x4, scoped, tag = 'scoped memory for tpu_custom_call.1']
    #allocation5 [shape = 'u8[32768]{0}', space=vmem, size = 0x8000, scoped, tag = 'output window, operand 0, single buffered']
    %9 = vsyncpa [#allocation3], 0
    %10 = vsyncpa [#allocation4], 0
    // Predicated region
    $region2: #{tpu_custom_call.1} parent=1 // pred_check
      _
    $region3: #{tpu_custom_call.1} parent=1 // pred_check_branch
      %12 = sbr.rel (0) target = $region5
    $region4: #{tpu_custom_call.1} parent=1 // pred_region
      _
    $region5: #{tpu_custom_call.1} parent=1 // pred_fallthru
      _
    // Predicated region
    $region6: #{tpu_custom_call.1} parent=1 // pred_check
      _
    $region7: #{tpu_custom_call.1} parent=1 // pred_check_branch
      %14 = sbr.rel (0) target = $region9
    $region8: #{tpu_custom_call.1} parent=1 // pred_region
      _
    $region9: #{tpu_custom_call.1} parent=1 // pred_fallthru
      _
    // Predicated region
    $region10: #{tpu_custom_call.1} parent=1 // pred_check
      _
    $region11: #{tpu_custom_call.1} parent=1 // pred_check_branch
      %16 = sbr.rel (0) target = $region13
    $region12: #{tpu_custom_call.1} parent=1 // pred_region
      _
    $region13: #{tpu_custom_call.1} parent=1 // pred_fallthru
      _
    // Predicated region
    $region14: #{tpu_custom_call.1} parent=1 // pred_check
      _
    $region15: #{tpu_custom_call.1} parent=1 // pred_check_branch
      %18 = sbr.rel (0) target = $region17
    $region16: #{tpu_custom_call.1} parent=1 // pred_region
      %20 = vsyncadd [#allocation3], 0
      %s21 = sshll.u32 %s3, 4
      %s22 = int_to_ptr.hbm [resolvable:$true] %s21
      %s23 = sshll.u32 [#allocation2], 4
      %s24 = int_to_ptr.vmem [resolvable:$true] %s23
      %29 = dma.hbm_to_vmem [thread:$0]  %s22, 2048, %s24, [#allocation3], 128, 128, 8
    $region17: #{tpu_custom_call.1} parent=1 // pred_fallthru
      _
    // Predicated region
    $region18: #{tpu_custom_call.1} parent=1 // pred_check
      _
    $region19: #{tpu_custom_call.1} parent=1 // pred_check_branch
      %31 = sbr.rel (0) target = $region21
    $region20: #{tpu_custom_call.1} parent=1 // pred_region
      %33 = dma.done [#allocation3], 2048
    $region21: #{tpu_custom_call.1} parent=1 // pred_fallthru
      _
    %v34 = vld [vmem:[%s0] sm:$0xff]
    %v35 = vld [vmem:[%s0 + $0x8] sm:$0xff]
    %v36 = vld [vmem:[%s0 + $0x10] sm:$0xff]
    %v37 = vld [vmem:[%s0 + $0x18] sm:$0xff]
    %v38 = vld [vmem:[%s0 + $0x20] sm:$0xff]
    %v39 = vld [vmem:[%s0 + $0x28] sm:$0xff]
    %v40 = vld [vmem:[%s0 + $0x30] sm:$0xff]
    %v41 = vld [vmem:[%s0 + $0x38] sm:$0xff]
    %v42 = vld [vmem:[%s1] sm:$0xff]
    %v43 = vld [vmem:[%s1 + $0x8] sm:$0xff]
    %v44 = vld [vmem:[%s2] sm:$0x1]
    %v46 = vperm.slane %v44, 0
    %vm48 = vcmask 130048
    %v50 = vsel %vm48, %v34, 0
    %v53 = vsel %vm48, %v35, 0
    %v56 = vsel %vm48, %v36, 0
    %v59 = vsel %vm48, %v37, 0
    %v62 = vsel %vm48, %v38, 0
    %v65 = vsel %vm48, %v39, 0
    %v68 = vsel %vm48, %v40, 0
    %v71 = vsel %vm48, %v41, 0
    %73 = vmatpush.msra.mxu0 0.0
    %74 = vmatpush.msra.mxu0 0.0
    %75 = vmatpush.msra.mxu0 0.0
    %76 = vmatpush.msra.mxu0 0.0
    %77 = vmatpush.msra.mxu0 0.0
    %78 = vmatpush.msra.mxu0 0.0
    %79 = vmatpush.msra.mxu0 0.0
    %80 = vmatpush.msra.mxu0 0.0
    %81 = vmatpush.msra.mxu0 0.0
    %82 = vmatpush.msra.mxu0 0.0
    %83 = vmatpush.msra.mxu0 0.0
    %84 = vmatpush.msra.mxu0 0.0
    %85 = vmatpush.msra.mxu0 0.0
    %86 = vmatpush.msra.mxu0 0.0
    %87 = vmatpush.msra.mxu0 %v43
    %88 = vmatpush.msra.mxu0 %v42
    %89 = vmatmul.f32.gmra.mxu0 %v50
    %v90 = vpop.f32.mrf.mxu0
    %v91 = vadd.f32 %v46, %v90
    %92 = vmatmul.f32.gmra.mxu0 %v53
    %v93 = vpop.f32.mrf.mxu0
    %v94 = vadd.f32 %v46, %v93
    %95 = vmatmul.f32.gmra.mxu0 %v56
    %v96 = vpop.f32.mrf.mxu0
    %v97 = vadd.f32 %v46, %v96
    %98 = vmatmul.f32.gmra.mxu0 %v59
    %v99 = vpop.f32.mrf.mxu0
    %v100 = vadd.f32 %v46, %v99
    %101 = vmatmul.f32.gmra.mxu0 %v62
    %v102 = vpop.f32.mrf.mxu0
    %v103 = vadd.f32 %v46, %v102
    %104 = vmatmul.f32.gmra.mxu0 %v65
    %v105 = vpop.f32.mrf.mxu0
    %v106 = vadd.f32 %v46, %v105
    %107 = vmatmul.f32.gmra.mxu0 %v68
    %v108 = vpop.f32.mrf.mxu0
    %v109 = vadd.f32 %v46, %v108
    %110 = vmatmul.f32.gmra.mxu0 %v71
    %v111 = vpop.f32.mrf.mxu0
    %v112 = vadd.f32 %v46, %v111
    %113 = vdwg.mxu0
    %114 = vst [vmem:[#allocation5] sm:$0xff] %v91
    %115 = vst [vmem:[#allocation5 + $0x8] sm:$0xff] %v94
    %116 = vst [vmem:[#allocation5 + $0x10] sm:$0xff] %v97
    %117 = vst [vmem:[#allocation5 + $0x18] sm:$0xff] %v100
    %118 = vst [vmem:[#allocation5 + $0x20] sm:$0xff] %v103
    %119 = vst [vmem:[#allocation5 + $0x28] sm:$0xff] %v106
    %120 = vst [vmem:[#allocation5 + $0x30] sm:$0xff] %v109
    %121 = vst [vmem:[#allocation5 + $0x38] sm:$0xff] %v112
    %v122 = vld [vmem:[#allocation2] sm:$0xff]
    %v123 = vld [vmem:[#allocation2 + $0x8] sm:$0xff]
    %v124 = vld [vmem:[#allocation2 + $0x10] sm:$0xff]
    %v125 = vld [vmem:[#allocation2 + $0x18] sm:$0xff]
    %v126 = vld [vmem:[#allocation2 + $0x20] sm:$0xff]
    %v127 = vld [vmem:[#allocation2 + $0x28] sm:$0xff]
    %v128 = vld [vmem:[#allocation2 + $0x30] sm:$0xff]
    %v129 = vld [vmem:[#allocation2 + $0x38] sm:$0xff]
    %v130 = vld [vmem:[#allocation2 + $0x40] sm:$0xff]
    %v131 = vld [vmem:[#allocation2 + $0x48] sm:$0xff]
    %v132 = vld [vmem:[#allocation2 + $0x50] sm:$0xff]
    %v133 = vld [vmem:[#allocation2 + $0x58] sm:$0xff]
    %v134 = vld [vmem:[#allocation2 + $0x60] sm:$0xff]
    %v135 = vld [vmem:[#allocation2 + $0x68] sm:$0xff]
    %v136 = vld [vmem:[#allocation2 + $0x70] sm:$0xff]
    %v137 = vld [vmem:[#allocation2 + $0x78] sm:$0xff]
    %v138 = vld [vmem:[#allocation5] sm:$0xff]
    %v139 = vld [vmem:[#allocation5 + $0x8] sm:$0xff]
    %v140 = vadd.f32 %v139, 0.0
    %v141 = vtanh.pop %v140
    %v142 = vld [vmem:[#allocation5 + $0x10] sm:$0xff]
    %143 = vmatpush.msra.mxu0 %v137
    %144 = vmatpush.msra.mxu0 %v136
    %145 = vmatpush.msra.mxu0 %v135
    %146 = vmatpush.msra.mxu0 %v134
    %147 = vmatpush.msra.mxu0 %v133
    %148 = vmatpush.msra.mxu0 %v132
    %149 = vmatpush.msra.mxu0 %v131
    %150 = vmatpush.msra.mxu0 %v130
    %151 = vmatpush.msra.mxu0 %v129
    %152 = vmatpush.msra.mxu0 %v128
    %153 = vmatpush.msra.mxu0 %v127
    %154 = vmatpush.msra.mxu0 %v126
    %155 = vmatpush.msra.mxu0 %v125
    %156 = vmatpush.msra.mxu0 %v124
    %157 = vmatpush.msra.mxu0 %v123
    %158 = vmatpush.msra.mxu0 %v122
    %159 = vmatmul.f32.gmra.mxu0 %v141
    %v160 = vpop.f32.mrf.mxu0
    %v161 = vadd.f32 0.0, %v160
    %162 = vdwg.mxu0
    %v163 = vadd.f32 %v142, %v161
    %164 = vst [vmem:[#allocation5 + $0x10] sm:$0xff] %v163
    %v165 = vadd.f32 %v163, %v141
    %v166 = vtanh.pop %v165
    %v167 = vld [vmem:[#allocation5 + $0x18] sm:$0xff]
    %168 = vmatpush.msra.mxu0 %v137
    %169 = vmatpush.msra.mxu0 %v136
    %170 = vmatpush.msra.mxu0 %v135
    %171 = vmatpush.msra.mxu0 %v134
    %172 = vmatpush.msra.mxu0 %v133
    %173 = vmatpush.msra.mxu0 %v132
    %174 = vmatpush.msra.mxu0 %v131
    %175 = vmatpush.msra.mxu0 %v130
    %176 = vmatpush.msra.mxu0 %v129
    %177 = vmatpush.msra.mxu0 %v128
    %178 = vmatpush.msra.mxu0 %v127
    %179 = vmatpush.msra.mxu0 %v126
    %180 = vmatpush.msra.mxu0 %v125
    %181 = vmatpush.msra.mxu0 %v124
    %182 = vmatpush.msra.mxu0 %v123
    %183 = vmatpush.msra.mxu0 %v122
    %184 = vmatmul.f32.gmra.mxu0 %v166
    %v185 = vpop.f32.mrf.mxu0
    %v186 = vadd.f32 0.0, %v185
    %187 = vdwg.mxu0
    %v188 = vadd.f32 %v167, %v186
    %189 = vst [vmem:[#allocation5 + $0x18] sm:$0xff] %v188
    %v190 = vadd.f32 %v188, %v166
    %v191 = vtanh.pop %v190
    %v192 = vld [vmem:[#allocation5 + $0x20] sm:$0xff]
    %193 = vmatpush.msra.mxu0 %v137
    %194 = vmatpush.msra.mxu0 %v136
    %195 = vmatpush.msra.mxu0 %v135
    %196 = vmatpush.msra.mxu0 %v134
    %197 = vmatpush.msra.mxu0 %v133
    %198 = vmatpush.msra.mxu0 %v132
    %199 = vmatpush.msra.mxu0 %v131
    %200 = vmatpush.msra.mxu0 %v130
    %201 = vmatpush.msra.mxu0 %v129
    %202 = vmatpush.msra.mxu0 %v128
    %203 = vmatpush.msra.mxu0 %v127
    %204 = vmatpush.msra.mxu0 %v126
    %205 = vmatpush.msra.mxu0 %v125
    %206 = vmatpush.msra.mxu0 %v124
    %207 = vmatpush.msra.mxu0 %v123
    %208 = vmatpush.msra.mxu0 %v122
    %209 = vmatmul.f32.gmra.mxu0 %v191
    %v210 = vpop.f32.mrf.mxu0
    %v211 = vadd.f32 0.0, %v210
    %212 = vdwg.mxu0
    %v213 = vadd.f32 %v192, %v211
    %214 = vst [vmem:[#allocation5 + $0x20] sm:$0xff] %v213
    %v215 = vadd.f32 %v213, %v191
    %v216 = vtanh.pop %v215
    %v217 = vld [vmem:[#allocation5 + $0x28] sm:$0xff]
    %218 = vmatpush.msra.mxu0 %v137
    %219 = vmatpush.msra.mxu0 %v136
    %220 = vmatpush.msra.mxu0 %v135
    %221 = vmatpush.msra.mxu0 %v134
    %222 = vmatpush.msra.mxu0 %v133
    %223 = vmatpush.msra.mxu0 %v132
    %224 = vmatpush.msra.mxu0 %v131
    %225 = vmatpush.msra.mxu0 %v130
    %226 = vmatpush.msra.mxu0 %v129
    %227 = vmatpush.msra.mxu0 %v128
    %228 = vmatpush.msra.mxu0 %v127
    %229 = vmatpush.msra.mxu0 %v126
    %230 = vmatpush.msra.mxu0 %v125
    %231 = vmatpush.msra.mxu0 %v124
    %232 = vmatpush.msra.mxu0 %v123
    %233 = vmatpush.msra.mxu0 %v122
    %234 = vmatmul.f32.gmra.mxu0 %v216
    %v235 = vpop.f32.mrf.mxu0
    %v236 = vadd.f32 0.0, %v235
    %237 = vdwg.mxu0
    %v238 = vadd.f32 %v217, %v236
    %239 = vst [vmem:[#allocation5 + $0x28] sm:$0xff] %v238
    %v240 = vadd.f32 %v238, %v216
    %v241 = vtanh.pop %v240
    %v242 = vld [vmem:[#allocation5 + $0x30] sm:$0xff]
    %243 = vmatpush.msra.mxu0 %v137
    %244 = vmatpush.msra.mxu0 %v136
    %245 = vmatpush.msra.mxu0 %v135
    %246 = vmatpush.msra.mxu0 %v134
    %247 = vmatpush.msra.mxu0 %v133
    %248 = vmatpush.msra.mxu0 %v132
    %249 = vmatpush.msra.mxu0 %v131
    %250 = vmatpush.msra.mxu0 %v130
    %251 = vmatpush.msra.mxu0 %v129
    %252 = vmatpush.msra.mxu0 %v128
    %253 = vmatpush.msra.mxu0 %v127
    %254 = vmatpush.msra.mxu0 %v126
    %255 = vmatpush.msra.mxu0 %v125
    %256 = vmatpush.msra.mxu0 %v124
    %257 = vmatpush.msra.mxu0 %v123
    %258 = vmatpush.msra.mxu0 %v122
    %259 = vmatmul.f32.gmra.mxu0 %v241
    %v260 = vpop.f32.mrf.mxu0
    %v261 = vadd.f32 0.0, %v260
    %262 = vdwg.mxu0
    %v263 = vadd.f32 %v242, %v261
    %264 = vst [vmem:[#allocation5 + $0x30] sm:$0xff] %v263
    %v265 = vadd.f32 %v263, %v138
    %v266 = vtanh.pop %v265
    %v267 = vld [vmem:[#allocation5 + $0x38] sm:$0xff]
    %268 = vmatpush.msra.mxu0 %v137
    %269 = vmatpush.msra.mxu0 %v136
    %270 = vmatpush.msra.mxu0 %v135
    %271 = vmatpush.msra.mxu0 %v134
    %272 = vmatpush.msra.mxu0 %v133
    %273 = vmatpush.msra.mxu0 %v132
    %274 = vmatpush.msra.mxu0 %v131
    %275 = vmatpush.msra.mxu0 %v130
    %276 = vmatpush.msra.mxu0 %v129
    %277 = vmatpush.msra.mxu0 %v128
    %278 = vmatpush.msra.mxu0 %v127
    %279 = vmatpush.msra.mxu0 %v126
    %280 = vmatpush.msra.mxu0 %v125
    %281 = vmatpush.msra.mxu0 %v124
    %282 = vmatpush.msra.mxu0 %v123
    %283 = vmatpush.msra.mxu0 %v122
    %284 = vmatmul.f32.gmra.mxu0 %v266
    %v285 = vpop.f32.mrf.mxu0
    %v286 = vadd.f32 0.0, %v285
    %287 = vdwg.mxu0
    %v288 = vadd.f32 %v267, %v286
    %289 = vst [vmem:[#allocation5 + $0x38] sm:$0xff] %v288
    // Predicated region
    $region22: #{tpu_custom_call.1} parent=1 // pred_check
      _
    $region23: #{tpu_custom_call.1} parent=1 // pred_check_branch
      %291 = sbr.rel (0) target = $region25
    $region24: #{tpu_custom_call.1} parent=1 // pred_region
      %293 = vsyncadd [#allocation4], 0
      %s294 = sshll.u32 [#allocation5], 4
      %s295 = int_to_ptr.vmem [resolvable:$true] %s294
      %s296 = sshll.u32 %s4, 4
      %s297 = int_to_ptr.hbm [resolvable:$true] %s296
      %302 = dma.vmem_to_hbm [thread:$0]  %s295, 1024, %s297, [#allocation4], 128, 128, 8
    $region25: #{tpu_custom_call.1} parent=1 // pred_fallthru
      _
    // Predicated region
    $region26: #{tpu_custom_call.1} parent=1 // pred_check
      _
    $region27: #{tpu_custom_call.1} parent=1 // pred_check_branch
      %304 = sbr.rel (0) target = $region29
    $region28: #{tpu_custom_call.1} parent=1 // pred_region
      %306 = dma.done [#allocation4], 1024
    $region29: #{tpu_custom_call.1} parent=1 // pred_fallthru
      _
    %307 = vsyncpa [#allocation3], 1
    %308 = vsyncpa [#allocation4], 1

</llo_original>
